<compile_context>
chip_gen: v5e
topology: v5e:2x2
jax: 0.10.0
libtpu: 0.0.40
codegen_flags: <defaults>
</compile_context>

<pallas_src>
import functools

import jax
import jax.numpy as jnp
from jax import lax
from jax.experimental import pallas as pl
from jax.experimental.pallas import tpu as pltpu


# --------------------------------------------------------------------------
# helpers
# --------------------------------------------------------------------------
def _tile(dim: int, pref: int) -> int:
    """Largest clean tile: `pref` if it divides `dim`, else the full dim."""
    return pref if (dim >= pref and dim % pref == 0) else dim


def _rope_rotate(x, cos, sin):
    """HF rotate-half RoPE on a (rows, D) f32 tile using an XLU lane roll."""
    d = x.shape[-1]
    half = d // 2
    # roll(x, half)[:, :half] = x[:, half:]  ;  roll(x, half)[:, half:] = x[:, :half]
    rot = pltpu.roll(x, shift=half, axis=1)
    col = lax.broadcasted_iota(jnp.int32, x.shape, 1)
    sign = jnp.where(col < half, -1.0, 1.0).astype(x.dtype)
    return x * cos + rot * sign * sin


# --------------------------------------------------------------------------
# Fused RMSNorm + matmul (used for the QKV projection)
# --------------------------------------------------------------------------
def _rmsnorm_matmul_kernel(x_ref, ln_ref, w_ref, o_ref, xn_ref, *, eps):
    @pl.when(pl.program_id(1) == 0)
    def _():
        x = x_ref[...].astype(jnp.float32)
        var = jnp.mean(x * x, axis=-1, keepdims=True)
        xn = x * lax.rsqrt(var + eps) * ln_ref[...].astype(jnp.float32)
        xn_ref[...] = xn.astype(xn_ref.dtype)

    o_ref[...] = jnp.dot(
        xn_ref[...], w_ref[...].astype(xn_ref.dtype),
        preferred_element_type=jnp.float32).astype(o_ref.dtype)


def rmsnorm_matmul(x, ln_w, w, *, eps, tm_pref=256, tn_pref=256):
    m, k = x.shape
    k2, n = w.shape
    assert k == k2
    tm, tn = _tile(m, tm_pref), _tile(n, tn_pref)
    return pl.pallas_call(
        functools.partial(_rmsnorm_matmul_kernel, eps=eps),
        out_shape=jax.ShapeDtypeStruct((m, n), x.dtype),
        grid_spec=pltpu.PrefetchScalarGridSpec(
            num_scalar_prefetch=0,
            grid=(m // tm, n // tn),
            in_specs=[
                pl.BlockSpec((tm, k), lambda i, j: (i, 0)),
                pl.BlockSpec((1, k), lambda i, j: (0, 0)),
                pl.BlockSpec((k, tn), lambda i, j: (0, j)),
            ],
            out_specs=pl.BlockSpec((tm, tn), lambda i, j: (i, j)),
            scratch_shapes=[pltpu.VMEM((tm, k), jnp.bfloat16)],
        ),
        compiler_params=pltpu.CompilerParams(
            dimension_semantics=("parallel", "arbitrary")),
    )(x, ln_w.reshape(1, k), w)


# --------------------------------------------------------------------------
# Matmul with fused residual epilogue (attention output projection)
# --------------------------------------------------------------------------
def _matmul_residual_kernel(a_ref, w_ref, r_ref, o_ref):
    acc = jnp.dot(a_ref[...].astype(jnp.bfloat16),
                  w_ref[...].astype(jnp.bfloat16),
                  preferred_element_type=jnp.float32)
    o_ref[...] = (acc + r_ref[...].astype(jnp.float32)).astype(o_ref.dtype)


def matmul_residual(a, w, resid, *, tm_pref=256, tn_pref=256):
    m, k = a.shape
    k2, n = w.shape
    assert k == k2
    tm, tn = _tile(m, tm_pref), _tile(n, tn_pref)
    return pl.pallas_call(
        _matmul_residual_kernel,
        out_shape=jax.ShapeDtypeStruct((m, n), a.dtype),
        grid_spec=pltpu.PrefetchScalarGridSpec(
            num_scalar_prefetch=0,
            grid=(m // tm, n // tn),
            in_specs=[
                pl.BlockSpec((tm, k), lambda i, j: (i, 0)),
                pl.BlockSpec((k, tn), lambda i, j: (0, j)),
                pl.BlockSpec((tm, tn), lambda i, j: (i, j)),
            ],
            out_specs=pl.BlockSpec((tm, tn), lambda i, j: (i, j)),
        ),
        compiler_params=pltpu.CompilerParams(
            dimension_semantics=("parallel", "parallel")),
    )(a, w, resid)


# --------------------------------------------------------------------------
# K/V cache: read k/v column slices of fused qkv, RoPE the keys, and write the
# (B, n_kv_heads, S, D) present_k / present_v layout.
# --------------------------------------------------------------------------
def _kv_rope_kernel(k_ref, v_ref, cos_ref, sin_ref, pk_ref, pv_ref):
    k = k_ref[...].astype(jnp.float32)
    cos = cos_ref[...].astype(jnp.float32)
    sin = sin_ref[...].astype(jnp.float32)
    pk_ref[0, 0] = _rope_rotate(k, cos, sin).astype(pk_ref.dtype)
    pv_ref[0, 0] = v_ref[...].astype(pv_ref.dtype)


def kv_rope_transpose(qkv, cos, sin, *, batch, seq, n_heads, n_kv_heads,
                      head_dim, ts_pref=256):
    ts = _tile(seq, ts_pref)
    sblocks = seq // ts
    nq, nkv, d = n_heads, n_kv_heads, head_dim

    k_map = lambda b, h, si: (b * sblocks + si, nq + h)
    v_map = lambda b, h, si: (b * sblocks + si, nq + nkv + h)
    cs_map = lambda b, h, si: (b * sblocks + si, 0)
    o_map = lambda b, h, si: (b, h, si, 0)

    out_shape = jax.ShapeDtypeStruct((batch, nkv, seq, d), qkv.dtype)
    return pl.pallas_call(
        _kv_rope_kernel,
        out_shape=(out_shape, out_shape),
        grid_spec=pltpu.PrefetchScalarGridSpec(
            num_scalar_prefetch=0,
            grid=(batch, nkv, sblocks),
            in_specs=[
                pl.BlockSpec((ts, d), k_map),
                pl.BlockSpec((ts, d), v_map),
                pl.BlockSpec((ts, d), cs_map),
                pl.BlockSpec((ts, d), cs_map),
            ],
            out_specs=(
                pl.BlockSpec((1, 1, ts, d), o_map),
                pl.BlockSpec((1, 1, ts, d), o_map),
            ),
        ),
        compiler_params=pltpu.CompilerParams(
            dimension_semantics=("parallel", "parallel", "parallel")),
    )(qkv, qkv, cos, sin)


# --------------------------------------------------------------------------
# Flash attention: Q-RoPE fused in the prologue, in-kernel iota causal mask,
# online softmax across the "arbitrary" KV axis, GQA via index_map.
# --------------------------------------------------------------------------
def _flash_attn_kernel(q_ref, cos_ref, sin_ref, k_ref, v_ref, o_ref,
                       qs_ref, m_ref, l_ref, acc_ref, *, scale, tq, tkv):
    qi = pl.program_id(2)
    kv = pl.program_id(3)

    @pl.when(kv == 0)
    def _():
        q = q_ref[...].astype(jnp.float32)
        cos = cos_ref[...].astype(jnp.float32)
        sin = sin_ref[...].astype(jnp.float32)
        # softmax scale folded into q once (S*D mults instead of S^2)
        qs_ref[...] = (_rope_rotate(q, cos, sin) * scale).astype(qs_ref.dtype)
        m_ref[...] = jnp.full_like(m_ref, -1e30)
        l_ref[...] = jnp.zeros_like(l_ref)
        acc_ref[...] = jnp.zeros_like(acc_ref)

    # Skip KV tiles that lie entirely in the causal future of this Q tile.
    @pl.when(kv * tkv <= qi * tq + (tq - 1))
    def _():
        k = k_ref[0, 0].astype(jnp.bfloat16)          # (tkv, D)
        v = v_ref[0, 0].astype(jnp.bfloat16)          # (tkv, D)
        s = lax.dot_general(qs_ref[...], k, (((1,), (1,)), ((), ())),
                            preferred_element_type=jnp.float32)   # (tq, tkv)

        q_pos = qi * tq + lax.broadcasted_iota(jnp.int32, s.shape, 0)
        k_pos = kv * tkv + lax.broadcasted_iota(jnp.int32, s.shape, 1)
        s = jnp.where(q_pos >= k_pos, s, -1e30)

        m_prev = m_ref[...]
        m_new = jnp.maximum(m_prev, jnp.max(s, axis=-1, keepdims=True))
        alpha = jnp.exp(m_prev - m_new)
        p = jnp.exp(s - m_new)
        l_ref[...] = alpha * l_ref[...] + jnp.sum(p, axis=-1, keepdims=True)
        acc_ref[...] = alpha * acc_ref[...] + jnp.dot(
            p.astype(jnp.bfloat16), v, preferred_element_type=jnp.float32)
        m_ref[...] = m_new

    @pl.when(kv == pl.num_programs(3) - 1)
    def _():
        o_ref[...] = (acc_ref[...] * pl.reciprocal(l_ref[...], approx=True)
                      ).astype(o_ref.dtype)


def flash_attention(qkv, pk, pv, cos, sin, *, n_heads, n_kv_heads, head_dim,
                    tq_pref=256, tkv_pref=256):
    batch, nkv, seq, d = pk.shape
    assert n_heads % n_kv_heads == 0
    group = n_heads // n_kv_heads
    tq = _tile(seq, tq_pref)
    tkv = _tile(seq, tkv_pref)
    qblocks = seq // tq
    m = qkv.shape[0]
    scale = float(d) ** -0.5

    q_map = lambda b, h, qi, kv: (b * qblocks + qi, h)
    cs_map = lambda b, h, qi, kv: (b * qblocks + qi, 0)
    kv_map = lambda b, h, qi, kv: (b, h // group, kv, 0)
    o_map = lambda b, h, qi, kv: (b * qblocks + qi, h)

    return pl.pallas_call(
        functools.partial(_flash_attn_kernel, scale=scale, tq=tq, tkv=tkv),
        out_shape=jax.ShapeDtypeStruct((m, n_heads * d), qkv.dtype),
        grid_spec=pltpu.PrefetchScalarGridSpec(
            num_scalar_prefetch=0,
            grid=(batch, n_heads, qblocks, seq // tkv),
            in_specs=[
                pl.BlockSpec((tq, d), q_map),          # q slice of fused qkv
                pl.BlockSpec((tq, d), cs_map),         # cos
                pl.BlockSpec((tq, d), cs_map),         # sin
                pl.BlockSpec((1, 1, tkv, d), kv_map),  # present_k (pre-RoPE'd)
                pl.BlockSpec((1, 1, tkv, d), kv_map),  # present_v
            ],
            out_specs=pl.BlockSpec((tq, d), o_map),
            scratch_shapes=[
                pltpu.VMEM((tq, d), jnp.bfloat16),     # rotated, scaled q
                pltpu.VMEM((tq, 1), jnp.float32),      # m
                pltpu.VMEM((tq, 1), jnp.float32),      # l
                pltpu.VMEM((tq, d), jnp.float32),      # acc
            ],
        ),
        compiler_params=pltpu.CompilerParams(
            dimension_semantics=("parallel", "parallel", "parallel",
                                 "arbitrary")),
    )(qkv, cos, sin, pk, pv)


# --------------------------------------------------------------------------
# Fully fused MLP: out = x + (silu(norm(x)@wg) * (norm(x)@wu)) @ wd
# Grid: (row tiles, INTER tiles as reduction).  No gate/up/act HBM traffic.
# --------------------------------------------------------------------------
def _mlp_kernel(x_ref, ln_ref, wg_ref, wu_ref, wd_ref, o_ref,
                xn_ref, acc_ref, *, eps):
    kk = pl.program_id(1)

    @pl.when(kk == 0)
    def _():
        x = x_ref[...].astype(jnp.float32)
        var = jnp.mean(x * x, axis=-1, keepdims=True)
        xn = x * lax.rsqrt(var + eps) * ln_ref[...].astype(jnp.float32)
        xn_ref[...] = xn.astype(xn_ref.dtype)
        acc_ref[...] = x                       # residual folded into accumulator

    xn = xn_ref[...]
    g = jnp.dot(xn, wg_ref[...].astype(xn.dtype),
                preferred_element_type=jnp.float32)
    u = jnp.dot(xn, wu_ref[...].astype(xn.dtype),
                preferred_element_type=jnp.float32)
    act = g * pl.reciprocal(1.0 + jnp.exp(-g), approx=True) * u   # silu(g)*u
    acc_ref[...] += jnp.dot(act.astype(jnp.bfloat16),
                            wd_ref[...].astype(jnp.bfloat16),
                            preferred_element_type=jnp.float32)

    @pl.when(kk == pl.num_programs(1) - 1)
    def _():
        o_ref[...] = acc_ref[...].astype(o_ref.dtype)


def fused_mlp(x, ln_w, wg, wu, wd, *, eps, tm_pref=256, tk_pref=512):
    m, h = x.shape
    _, inter = wg.shape
    tm, tk = _tile(m, tm_pref), _tile(inter, tk_pref)
    return pl.pallas_call(
        functools.partial(_mlp_kernel, eps=eps),
        out_shape=jax.ShapeDtypeStruct((m, h), x.dtype),
        grid_spec=pltpu.PrefetchScalarGridSpec(
            num_scalar_prefetch=0,
            grid=(m // tm, inter // tk),
            in_specs=[
                pl.BlockSpec((tm, h), lambda i, k: (i, 0)),
                pl.BlockSpec((1, h), lambda i, k: (0, 0)),
                pl.BlockSpec((h, tk), lambda i, k: (0, k)),
                pl.BlockSpec((h, tk), lambda i, k: (0, k)),
                pl.BlockSpec((tk, h), lambda i, k: (k, 0)),
            ],
            out_specs=pl.BlockSpec((tm, h), lambda i, k: (i, 0)),
            scratch_shapes=[pltpu.VMEM((tm, h), jnp.bfloat16),
                            pltpu.VMEM((tm, h), jnp.float32)],
        ),
        compiler_params=pltpu.CompilerParams(
            dimension_semantics=("parallel", "arbitrary")),
    )(x, ln_w.reshape(1, h), wg, wu, wd)


# --------------------------------------------------------------------------
# Rotary tables (tiny jnp glue; matches HF Llama/Yi rotary_emb)
# --------------------------------------------------------------------------
def rope_cos_sin(position_ids, head_dim, theta):
    pos = position_ids.reshape(-1).astype(jnp.float32)          # (B*S,)
    inv_freq = 1.0 / (theta ** (jnp.arange(0, head_dim, 2, dtype=jnp.float32)
                                / head_dim))
    freqs = pos[:, None] * inv_freq[None, :]                    # (B*S, D/2)
    emb = jnp.concatenate([freqs, freqs], axis=-1)              # (B*S, D)
    return jnp.cos(emb), jnp.sin(emb)


# --------------------------------------------------------------------------
# Full Block forward (== Yi/Llama decoder layer, use_cache=True)
# --------------------------------------------------------------------------
def block_forward(params, hidden_states, position_ids, attention_mask=None, *,
                  n_heads, n_kv_heads, eps, rope_theta):
    # TODO(synk): the explicit additive `attention_mask` is not consumed; the
    # attention kernel builds the standard causal mask with iota comparisons
    # (padding / non-causal masks would need a per-row length prefetch).
    del attention_mask
    B, S, H = hidden_states.shape
    D = H // n_heads
    M = B * S
    x2d = hidden_states.reshape(M, H)

    # Fused [wq | wk | wv] so the normed activation is read once (in a real
    # deployment this concat would be done once at weight-load time).
    wqkv = jnp.concatenate([params["wq"], params["wk"], params["wv"]], axis=1)

    # --- self attention -----------------------------------------------------
    qkv = rmsnorm_matmul(x2d, params["input_ln"], wqkv, eps=eps)

    cos, sin = rope_cos_sin(position_ids, D, rope_theta)        # (M, D)

    present_k, present_v = kv_rope_transpose(
        qkv, cos, sin, batch=B, seq=S, n_heads=n_heads,
        n_kv_heads=n_kv_heads, head_dim=D)

    attn2d = flash_attention(qkv, present_k, present_v, cos, sin,
                             n_heads=n_heads, n_kv_heads=n_kv_heads,
                             head_dim=D)                        # (M, H)

    h1 = matmul_residual(attn2d, params["wo"], x2d)             # + residual

    # --- MLP ------------------------------------------------------------------
    h2 = fused_mlp(h1, params["post_ln"], params["wg"], params["wu"],
                   params["wd"], eps=eps)                       # + residual

    return h2.reshape(B, S, H), present_k, present_v


# --------------------------------------------------------------------------
# Pure-JAX reference (same math, no Pallas)
# --------------------------------------------------------------------------
def block_forward_ref(params, hidden_states, position_ids, attention_mask, *,
                      n_heads, n_kv_heads, eps, rope_theta):
    B, S, H = hidden_states.shape
    D = H // n_heads
    x = hidden_states.astype(jnp.float32).reshape(B * S, H)

    def rms(t, w):
        var = jnp.mean(t * t, axis=-1, keepdims=True)
        return t * jax.lax.rsqrt(var + eps) * w

    h = rms(x, params["input_ln"])
    q = (h @ params["wq"]).reshape(B, S, n_heads, D).transpose(0, 2, 1, 3)
    k = (h @ params["wk"]).reshape(B, S, n_kv_heads, D).transpose(0, 2, 1, 3)
    v = (h @ params["wv"]).reshape(B, S, n_kv_heads, D).transpose(0, 2, 1, 3)

    pos = position_ids.astype(jnp.float32)
    inv_freq = 1.0 / (rope_theta ** (jnp.arange(0, D, 2, dtype=jnp.float32) / D))
    freqs = pos[..., None] * inv_freq[None, None, :]
    emb = jnp.concatenate([freqs, freqs], axis=-1)              # (B, S, D)
    cos, sin = jnp.cos(emb), jnp.sin(emb)

    def rope(t):
        half = D // 2
        rot = jnp.concatenate([-t[..., half:], t[..., :half]], axis=-1)
        return t * cos[:, None] + rot * sin[:, None]

    q, k = rope(q), rope(k)
    pk, pv = k, v

    group = n_heads // n_kv_heads
    kr = jnp.repeat(k, group, axis=1)
    vr = jnp.repeat(v, group, axis=1)
    s = jnp.einsum("bhqd,bhkd->bhqk", q, kr) * (float(D) ** -0.5)
    s = s + attention_mask
    p = jax.nn.softmax(s, axis=-1)
    o = jnp.einsum("bhqk,bhkd->bhqd", p, vr)
    o = o.transpose(0, 2, 1, 3).reshape(B * S, H)

    h1 = x + o @ params["wo"]
    h2 = rms(h1, params["post_ln"])
    g = h2 @ params["wg"]
    u = h2 @ params["wu"]
    mlp = (g * jax.nn.sigmoid(g) * u) @ params["wd"]
    out = (h1 + mlp).reshape(B, S, H)
    return out, pk, pv


# --------------------------------------------------------------------------
if __name__ == "__main__":
    # Small deterministic Yi-like config (head_dim=128 -> lane-dense blocks).
    B, S = 2, 8
    N_HEADS, N_KV_HEADS = 2, 1          # GQA
    D = 128
    H = N_HEADS * D                     # 256
    INTER = 512
    EPS = 1e-6
    THETA = 10000.0

    key = jax.random.PRNGKey(0)
    ks = jax.random.split(key, 12)

    def w(kk, shape, fan_in):
        return (fan_in ** -0.5) * jax.random.normal(kk, shape, dtype=jnp.float32)

    params = {
        "input_ln": 1.0 + 0.1 * jax.random.normal(ks[0], (H,), dtype=jnp.float32),
        "post_ln": 1.0 + 0.1 * jax.random.normal(ks[1], (H,), dtype=jnp.float32),
        "wq": w(ks[2], (H, N_HEADS * D), H),
        "wk": w(ks[3], (H, N_KV_HEADS * D), H),
        "wv": w(ks[4], (H, N_KV_HEADS * D), H),
        "wo": w(ks[5], (N_HEADS * D, H), H),
        "wg": w(ks[6], (H, INTER), H),
        "wu": w(ks[7], (H, INTER), H),
        "wd": w(ks[8], (INTER, H), INTER),
    }

    hidden_states = jax.random.normal(ks[9], (B, S, H), dtype=jnp.float32)
    position_ids = jnp.broadcast_to(jnp.arange(S, dtype=jnp.int32)[None, :], (B, S))
    causal = jnp.tril(jnp.ones((S, S), dtype=bool))
    attention_mask = jnp.broadcast_to(
        jnp.where(causal, 0.0, -1e9).astype(jnp.float32)[None, None], (B, 1, S, S))

    cfg = dict(n_heads=N_HEADS, n_kv_heads=N_KV_HEADS, eps=EPS, rope_theta=THETA)

    out_h, out_k, out_v = block_forward(
        params, hidden_states, position_ids, attention_mask, **cfg)
    out_h, out_k, out_v = jax.block_until_ready((out_h, out_k, out_v))

    ref_h, ref_k, ref_v = block_forward_ref(
        params, hidden_states, position_ids, attention_mask, **cfg)

    assert out_h.shape == (B, S, H)
    assert out_k.shape == (B, N_KV_HEADS, S, D)
    assert out_v.shape == (B, N_KV_HEADS, S, D)
    # bf16 MXU operands (fp32 accumulation) -> slightly looser tolerances.
    assert jnp.allclose(out_k, ref_k, rtol=3e-2, atol=3e-2), "present_k mismatch"
    assert jnp.allclose(out_v, ref_v, rtol=3e-2, atol=3e-2), "present_v mismatch"
    assert jnp.allclose(out_h, ref_h, rtol=5e-2, atol=5e-2), "hidden_states mismatch"

    print("KERNEL_OK")
</pallas_src>

<mosaic_0001>
module attributes {stable_mosaic.version = 11 : i64} {
  func.func @_rmsnorm_matmul_kernel(%arg0: i32, %arg1: i32, %arg2: memref<16x256xf32, #tpu.memory_space<vmem>>, %arg3: memref<1x256xf32, #tpu.memory_space<vmem>>, %arg4: memref<256x256xf32, #tpu.memory_space<vmem>>, %arg5: memref<16x256xf32, #tpu.memory_space<vmem>>, %arg6: memref<16x256xbf16, #tpu.memory_space<vmem>>) attributes {dimension_semantics = [#tpu.dimension_semantics<parallel>, #tpu.dimension_semantics<arbitrary>], iteration_bounds = array<i64: 1, 2>, scalar_prefetch = 0 : i64, scratch_operands = 1 : i64, tpu.core_type = #tpu.core_type<tc>, window_params = [{transform_indices = @transform_0, window_bounds = array<i64: 16, 256>}, {pipeline_mode = #tpu.pipeline_mode<synchronous>, transform_indices = @transform_1, window_bounds = array<i64: 1, 256>}, {transform_indices = @transform_2, window_bounds = array<i64: 256, 256>}, {transform_indices = @transform_3, window_bounds = array<i64: 16, 256>}]} {
    %c0_i32 = arith.constant 0 : i32
    %0 = arith.cmpi eq, %arg1, %c0_i32 : i32
    %1 = arith.extui %0 : i1 to i32
    %c0_i32_0 = arith.constant 0 : i32
    %2 = arith.cmpi ne, %1, %c0_i32_0 : i32
    scf.if %2 {
      %c0_6 = arith.constant 0 : index
      %c0_7 = arith.constant 0 : index
      %8 = vector.load %arg2[%c0_6, %c0_7] : memref<16x256xf32, #tpu.memory_space<vmem>>, vector<16x256xf32>
      %9 = arith.mulf %8, %8 : vector<16x256xf32>
      %cst_8 = arith.constant dense<0.000000e+00> : vector<16xf32>
      %10 = vector.multi_reduction <add>, %9, %cst_8 [1] : vector<16x256xf32> to vector<16xf32>
      %11 = vector.shape_cast %10 : vector<16xf32> to vector<16x1xf32>
      %cst_9 = arith.constant 2.560000e+02 : f32
      %12 = vector.broadcast %cst_9 : f32 to vector<16x1xf32>
      %13 = arith.divf %11, %12 : vector<16x1xf32>
      %cst_10 = arith.constant 9.99999997E-7 : f32
      %14 = vector.broadcast %cst_10 : f32 to vector<16x1xf32>
      %15 = arith.addf %13, %14 : vector<16x1xf32>
      %16 = math.rsqrt %15 : vector<16x1xf32>
      %17 = vector.broadcast %16 : vector<16x1xf32> to vector<16x256xf32>
      %18 = arith.mulf %8, %17 : vector<16x256xf32>
      %c0_11 = arith.constant 0 : index
      %c0_12 = arith.constant 0 : index
      %19 = vector.load %arg3[%c0_11, %c0_12] : memref<1x256xf32, #tpu.memory_space<vmem>>, vector<1x256xf32>
      %20 = vector.broadcast %19 : vector<1x256xf32> to vector<16x256xf32>
      %21 = arith.mulf %18, %20 : vector<16x256xf32>
      %22 = arith.truncf %21 : vector<16x256xf32> to vector<16x256xbf16>
      %c0_13 = arith.constant 0 : index
      %c0_14 = arith.constant 0 : index
      %23 = vector.load %arg6[%c0_13, %c0_14] : memref<16x256xbf16, #tpu.memory_space<vmem>>, vector<16x256xbf16>
      tpu.vector_store %arg6[%c0_13, %c0_14], %22 {strides = array<i32>} : memref<16x256xbf16, #tpu.memory_space<vmem>>, vector<16x256xbf16>,
    } else {
    }
    %c0 = arith.constant 0 : index
    %c0_1 = arith.constant 0 : index
    %3 = vector.load %arg6[%c0, %c0_1] : memref<16x256xbf16, #tpu.memory_space<vmem>>, vector<16x256xbf16>
    %c0_2 = arith.constant 0 : index
    %c0_3 = arith.constant 0 : index
    %4 = vector.load %arg4[%c0_2, %c0_3] : memref<256x256xf32, #tpu.memory_space<vmem>>, vector<256x256xf32>
    %5 = arith.truncf %4 : vector<256x256xf32> to vector<256x256xbf16>
    %cst = arith.constant dense<0.000000e+00> : vector<16x256xf32>
    %6 = tpu.matmul %3, %5, %cst {dimension_numbers = #tpu.dot_dimension_numbers<[1], [0], [0], [1], [0, 0, 1, 1], [], []>} : vector<16x256xbf16>, vector<256x256xbf16>, vector<16x256xf32> -> vector<16x256xf32>
    %c0_4 = arith.constant 0 : index
    %c0_5 = arith.constant 0 : index
    %7 = vector.load %arg5[%c0_4, %c0_5] : memref<16x256xf32, #tpu.memory_space<vmem>>, vector<16x256xf32>
    tpu.vector_store %arg5[%c0_4, %c0_5], %6 {strides = array<i32>} : memref<16x256xf32, #tpu.memory_space<vmem>>, vector<16x256xf32>,
    return
  }
  func.func @transform_0(%arg0: i32, %arg1: i32) -> (i32, i32) {
    %c0_i32 = arith.constant 0 : i32
    %c0_i32_0 = arith.constant 0 : i32
    return %arg0, %c0_i32 : i32, i32
  }
  func.func @transform_1(%arg0: i32, %arg1: i32) -> (i32, i32) {
    %c0_i32 = arith.constant 0 : i32
    %c0_i32_0 = arith.constant 0 : i32
    %c0_i32_1 = arith.constant 0 : i32
    return %c0_i32, %c0_i32_0 : i32, i32
  }
  func.func @transform_2(%arg0: i32, %arg1: i32) -> (i32, i32) {
    %c0_i32 = arith.constant 0 : i32
    %c0_i32_0 = arith.constant 0 : i32
    return %c0_i32, %arg1 : i32, i32
  }
  func.func @transform_3(%arg0: i32, %arg1: i32) -> (i32, i32) {
    %c0_i32 = arith.constant 0 : i32
    return %arg0, %arg1 : i32, i32
  }
}

</mosaic_0001>

<llo_original>
// kernel: tpu_custom_call.1
$region0: #{tpu_custom_call.1}
  #allocation0 [shape = 'u32[]', space=smem, size = 0x4, offset = 0x4, fixed_abs, tag = 'smem constant byte address 0x4 - core index']
  #allocation1 [shape = 'u32[72,128]{1,0:T(1,128)}', space=vmem, size = 0x9000, scoped, tag = 'internal scratch']
  #allocation2 [shape = 'bf16[16,256]{1,0:T(8,128)(2,1)}', space=vmem, size = 0x2000, scoped, tag = 'scratch operand']
  %s0 = inlined_call_operand.hbm [shape: f32[16,256], index: 0, kind: input, shape index: {}]
  %s1 = inlined_call_operand.hbm [shape: f32[1,256], index: 1, kind: input, shape index: {}]
  %s2 = inlined_call_operand.hbm [shape: f32[256,512], index: 2, kind: input, shape index: {}]
  %s3 = inlined_call_operand.hbm [shape: f32[16,512], index: 3, kind: output, shape index: {}]
  %s4 = sld [smem:[#allocation0]]
  $region61: #{tpu_custom_call.1} parent=0
    _
  %s6 = ssub.s32 1, %s4
  %s7 = scalar_select 0, %s6, %s4
  $region1: #{tpu_custom_call.1} parent=0
    #allocation3 [shape = 'u8[16384]{0}', space=vmem, size = 0x4000, scoped, tag = 'input window, operand 0, single buffered']
    #allocation4 [shape = 's32[2]{0}', space=sflag, size = 0x8, scoped, tag = 'scoped memory for tpu_custom_call.1']
    #allocation5 [shape = 's32[2]{0}', space=sflag, size = 0x8, scoped, tag = 'scoped memory for tpu_custom_call.1']
    #allocation6 [shape = 'u8[1024]{0}', space=vmem, size = 0x400, scoped, tag = 'input window, operand 1, single buffered']
    #allocation7 [shape = 's32[1]{0}', space=sflag, size = 0x4, scoped, tag = 'scoped memory for tpu_custom_call.1']
    #allocation8 [shape = 'u8[524288]{0}', space=vmem, size = 0x80000, scoped, tag = 'input window, operand 2']
    #allocation9 [shape = 'u8[32768]{0}', space=vmem, size = 0x8000, scoped, tag = 'output window, operand 0']
    %8 = vsyncpa [#allocation4], 0
    %9 = vsyncpa [#allocation7], 0
    %10 = vsyncpa [#allocation5], 0
    %s11 = scalar_lea.sflag [#allocation5], 1
    %12 = vsyncpa %s11, 0
    loop: start=0, step=1, limit=4
    $region2: #{tpu_custom_call.1} parent=1 // loop_pre_header
      _
    $region3: #{tpu_custom_call.1} parent=1 // loop_header
      %s14 = sphi 0, %s18
      %p15 = scmp.ge.s32.totalorder %s14, 4
      %s21 = sphi 0, %s33
      %s22 = sphi 0, %s29
      %s23 = sphi 0, %s21
      %s24 = sphi 0, %s22
      %s25 = sphi 0, %s23
      %s26 = sphi 0, %s24
      %s36 = sphi 0, %s38
      %s39 = sphi 0, %s36
      %s40 = sphi 0, %s39
      %s56 = sphi 0, %s40
      %s60 = sphi 0, %s60
      %s62 = sphi 0, %s60
      %s63 = sphi 0, %s62
      %s77 = sphi 0, %s63
      %s83 = sphi 0, %s85
      %s86 = sphi 0, %s83
      %s87 = sphi 0, %s86
      %s103 = sphi 0, %s87
      %s111 = sphi 0, %s113
      %s114 = sphi 0, %s111
      %s115 = sphi 0, %s114
      %s131 = sphi 0, %s115
    $region4: #{tpu_custom_call.1} parent=1 // loop_header_branch
      %17 = sbr.rel (%p15) target = $region8
    $region5: #{tpu_custom_call.1} parent=1 // loop_body
      %s19 = ssub.s32 %s14, 1
      %s20 = ssub.s32 %s14, 2
      %s27 = sadd.s32 1, %s22
      %p28 = scmp.ge.s32.totalorder %s27, 2
      %s29 = scalar_select %p28, 0, %s27
      %s30 = sadd.s32 1, %s21
      %s31 = scalar_select %p28, %s30, %s21
      %p32 = scmp.ge.s32.totalorder %s31, 1
      %s33 = scalar_select %p32, 0, %s31
      %s34 = ssub.s32 %s21, %s33
      %p35 = scmp.eq.s32.totalorder %s34, 0
      %s37 = sadd.s32 %s36, 1
      %s38 = scalar_select %p35, %s36, %s37
      %p41 = pneg %p35
      %p42 = scmp.eq.s32.totalorder %s14, 1
      %p43 = por %p41, %p42
      %p44 = scmp.ne.s32.totalorder %s36, %s39
      %p45 = scmp.eq.s32.totalorder %s14, 0
      %p46 = por %p44, %p45
      %p47 = scmp.ne.s32.totalorder %s36, %s39
      %p48 = scmp.eq.s32.totalorder %s19, 1
      %p49 = por %p47, %p48
      %p50 = scmp.ne.s32.totalorder %s39, %s40
      %p51 = scmp.eq.s32.totalorder %s19, 0
      %p52 = por %p50, %p51
      %p53 = scmp.ne.s32.totalorder %s39, %s40
      %p54 = scmp.eq.s32.totalorder %s20, 1
      %p55 = por %p53, %p54
      %p57 = scmp.ne.s32.totalorder %s40, %s56
      %p58 = scmp.eq.s32.totalorder %s20, 0
      %p59 = por %p57, %p58
      %s61 = sadd.s32 %s60, 1
      %p64 = scmp.eq.s32.totalorder %s14, 1
      %p65 = scmp.ne.s32.totalorder %s60, %s62
      %p66 = scmp.eq.s32.totalorder %s14, 0
      %p67 = por %p65, %p66
      %p68 = scmp.ne.s32.totalorder %s60, %s62
      %p69 = scmp.eq.s32.totalorder %s19, 1
      %p70 = por %p68, %p69
      %p71 = scmp.ne.s32.totalorder %s62, %s63
      %p72 = scmp.eq.s32.totalorder %s19, 0
      %p73 = por %p71, %p72
      %p74 = scmp.ne.s32.totalorder %s62, %s63
      %p75 = scmp.eq.s32.totalorder %s20, 1
      %p76 = por %p74, %p75
      %p78 = scmp.ne.s32.totalorder %s63, %s77
      %p79 = scmp.eq.s32.totalorder %s20, 0
      %p80 = por %p78, %p79
      %s81 = ssub.s32 %s22, %s29
      %p82 = scmp.eq.s32.totalorder %s81, 0
      %s84 = sadd.s32 %s83, 1
      %s85 = scalar_select %p82, %s83, %s84
      %p88 = pneg %p82
      %p89 = scmp.eq.s32.totalorder %s14, 1
      %p90 = por %p88, %p89
      %p91 = scmp.ne.s32.totalorder %s83, %s86
      %p92 = scmp.eq.s32.totalorder %s14, 0
      %p93 = por %p91, %p92
      %p94 = scmp.ne.s32.totalorder %s83, %s86
      %p95 = scmp.eq.s32.totalorder %s19, 1
      %p96 = por %p94, %p95
      %p97 = scmp.ne.s32.totalorder %s86, %s87
      %p98 = scmp.eq.s32.totalorder %s19, 0
      %p99 = por %p97, %p98
      %p100 = scmp.ne.s32.totalorder %s86, %s87
      %p101 = scmp.eq.s32.totalorder %s20, 1
      %p102 = por %p100, %p101
      %p104 = scmp.ne.s32.totalorder %s87, %s103
      %p105 = scmp.eq.s32.totalorder %s20, 0
      %p106 = por %p104, %p105
      %s107 = ssub.s32 %s21, %s33
      %s108 = ssub.s32 %s22, %s29
      %s109 = sor.u32 %s107, %s108
      %p110 = scmp.eq.s32.totalorder %s109, 0
      %s112 = sadd.s32 %s111, 1
      %s113 = scalar_select %p110, %s111, %s112
      %p116 = pneg %p110
      %p117 = scmp.eq.s32.totalorder %s14, 1
      %p118 = por %p116, %p117
      %p119 = scmp.ne.s32.totalorder %s111, %s114
      %p120 = scmp.eq.s32.totalorder %s14, 0
      %p121 = por %p119, %p120
      %p122 = scmp.ne.s32.totalorder %s111, %s114
      %p123 = scmp.eq.s32.totalorder %s19, 1
      %p124 = por %p122, %p123
      %p125 = scmp.ne.s32.totalorder %s114, %s115
      %p126 = scmp.eq.s32.totalorder %s19, 0
      %p127 = por %p125, %p126
      %p128 = scmp.ne.s32.totalorder %s114, %s115
      %p129 = scmp.eq.s32.totalorder %s20, 1
      %p130 = por %p128, %p129
      %p132 = scmp.ne.s32.totalorder %s115, %s131
      %p133 = scmp.eq.s32.totalorder %s20, 0
      %p134 = por %p132, %p133
      %p135 = scmp.le.s32.totalorder 1, %s14
      %p136 = scmp.lt.s32.totalorder %s14, 3
      %p137 = pnand %p135, %p136
      %p138 = pneg %p137
      // Predicated region
      $region9: #{tpu_custom_call.1} parent=5 // pred_check
        _
      $region10: #{tpu_custom_call.1} parent=5 // pred_check_branch
        %140 = sbr.rel (%p137) target = $region12
      $region11: #{tpu_custom_call.1} parent=5 // pred_region
        %s141 = ssub.s32 %s14, 1
        // Predicated region
        $region13: #{tpu_custom_call.1} parent=11 // pred_check
          %p142 = pneg %p52
        $region14: #{tpu_custom_call.1} parent=11 // pred_check_branch
          %144 = sbr.rel (%p142) target = $region16
        $region15: #{tpu_custom_call.1} parent=11 // pred_region
          %s145 = smul.u32 2, %s23
          %147 = vsyncadd [#allocation4], 0
          %s148 = smul.addr %s145, 2
          %s149 = smul.addr %s148, 8
          %s150 = scalar_lea.hbm %s0, %s149
          %s151 = sshll.u32 %s150, 4
          %s152 = int_to_ptr.hbm [resolvable:$true] %s151
          %s153 = sshll.u32 [#allocation3], 4
          %s154 = int_to_ptr.vmem [resolvable:$true] %s153
          %159 = dma.hbm_to_vmem [thread:$0]  %s152, 512, %s154, [#allocation4], 256, 256, 16
        $region16: #{tpu_custom_call.1} parent=11 // pred_fallthru
          _
        // Predicated region
        $region17: #{tpu_custom_call.1} parent=11 // pred_check
          %p160 = pneg %p73
        $region18: #{tpu_custom_call.1} parent=11 // pred_check_branch
          %162 = sbr.rel (%p160) target = $region20
        $region19: #{tpu_custom_call.1} parent=11 // pred_region
          %164 = vsyncadd [#allocation7], 0
          %s166 = sshll.u32 %s1, 4
          %s167 = int_to_ptr.hbm [resolvable:$true] %s166
          %s168 = sshll.u32 [#allocation6], 4
          %s169 = int_to_ptr.vmem [resolvable:$true] %s168
          %171 = dma.hbm_to_vmem [thread:$0]  %s167, 32, %s169, [#allocation7]
        $region20: #{tpu_custom_call.1} parent=11 // pred_fallthru
          _
      $region12: #{tpu_custom_call.1} parent=5 // pred_fallthru
        _
      %p172 = scmp.lt.s32.totalorder %s14, 2
      // Predicated region
      $region21: #{tpu_custom_call.1} parent=5 // pred_check
        %p173 = pneg %p172
      $region22: #{tpu_custom_call.1} parent=5 // pred_check_branch
        %175 = sbr.rel (%p173) target = $region24
      $region23: #{tpu_custom_call.1} parent=5 // pred_region
        // Predicated region
        $region25: #{tpu_custom_call.1} parent=23 // pred_check
          %p176 = pneg %p93
        $region26: #{tpu_custom_call.1} parent=23 // pred_check_branch
          %178 = sbr.rel (%p176) target = $region28
        $region27: #{tpu_custom_call.1} parent=23 // pred_region
          %s179 = sand.u32 %s14, 1
          %s180 = scalar_lea.sflag [#allocation4], %s179
          %s181 = sand.u32 %s83, 1
          %s182 = smul.addr %s181, 512
          %s183 = scalar_lea.vmem [#allocation8], %s182
          %s184 = smul.u32 2, %s22
          %186 = vsyncadd %s180, 0
          %s187 = smul.addr %s184, 8
          %s188 = scalar_lea.hbm %s2, %s187
          %s189 = sshll.u32 %s188, 4
          %s190 = int_to_ptr.hbm [resolvable:$true] %s189
          %s191 = sshll.u32 %s183, 4
          %s192 = int_to_ptr.vmem [resolvable:$true] %s191
          %197 = dma.hbm_to_vmem [thread:$0]  %s190, 8192, %s192, %s180, 512, 256, 16
        $region28: #{tpu_custom_call.1} parent=23 // pred_fallthru
          _
      $region24: #{tpu_custom_call.1} parent=5 // pred_fallthru
        _
      %p198 = scmp.le.s32.totalorder 1, %s14
      %p199 = scmp.lt.s32.totalorder %s14, 3
      %p200 = pnand %p198, %p199
      %p201 = pneg %p200
      // Predicated region
      $region29: #{tpu_custom_call.1} parent=5 // pred_check
        _
      $region30: #{tpu_custom_call.1} parent=5 // pred_check_branch
        %203 = sbr.rel (%p200) target = $region32
      $region31: #{tpu_custom_call.1} parent=5 // pred_region
        %s204 = ssub.s32 %s14, 1
        // Predicated region
        $region33: #{tpu_custom_call.1} parent=31 // pred_check
          %p205 = pneg %p52
        $region34: #{tpu_custom_call.1} parent=31 // pred_check_branch
          %207 = sbr.rel (%p205) target = $region36
        $region35: #{tpu_custom_call.1} parent=31 // pred_region
          %209 = dma.done [#allocation4], 512
        $region36: #{tpu_custom_call.1} parent=31 // pred_fallthru
          _
        // Predicated region
        $region37: #{tpu_custom_call.1} parent=31 // pred_check
          %p210 = pneg %p73
        $region38: #{tpu_custom_call.1} parent=31 // pred_check_branch
          %212 = sbr.rel (%p210) target = $region40
        $region39: #{tpu_custom_call.1} parent=31 // pred_region
          %214 = dma.done [#allocation7], 32
        $region40: #{tpu_custom_call.1} parent=31 // pred_fallthru
          _
        %s215 = sand.u32 %s19, 1
        %s216 = scalar_lea.sflag [#allocation4], %s215
        %s217 = sand.u32 %s86, 1
        %s218 = smul.addr %s217, 512
        %s219 = scalar_lea.vmem [#allocation8], %s218
        // Predicated region
        $region41: #{tpu_custom_call.1} parent=31 // pred_check
          %p220 = pneg %p99
        $region42: #{tpu_custom_call.1} parent=31 // pred_check_branch
          %222 = sbr.rel (%p220) target = $region44
        $region43: #{tpu_custom_call.1} parent=31 // pred_region
          %224 = dma.done %s216, 8192
        $region44: #{tpu_custom_call.1} parent=31 // pred_fallthru
          _
        %p225 = pneg %p52
        %p226 = pneg %p49
        %p227 = pneg %p73
        %p228 = pneg %p70
        %s229 = sand.u32 %s19, 1
        %s230 = scalar_lea.sflag [#allocation4], %s229
        %s231 = sand.u32 %s86, 1
        %s232 = smul.addr %s231, 512
        %s233 = scalar_lea.vmem [#allocation8], %s232
        %p234 = pneg %p99
        %p235 = pneg %p96
        %p236 = pneg %p127
        %p237 = pneg %p124
        %s238 = sand.u32 %s114, 1
        %s239 = scalar_lea.sflag [#allocation5], %s238
        %s240 = sand.u32 %s114, 1
        %s241 = smul.addr %s240, 32
        %s242 = scalar_lea.vmem [#allocation9], %s241
        %s243 = smul.u32 2, %s23
        %s244 = smul.u32 2, %s24
        %s245 = smul.u32 2, %s23
        %s246 = smul.u32 2, %s24
        %p247 = scmp.eq.s32.totalorder %s24, 0
        // Predicated region
        $region45: #{tpu_custom_call.1} parent=31 // pred_check
          %p248 = pneg %p247
        $region46: #{tpu_custom_call.1} parent=31 // pred_check_branch
          %250 = sbr.rel (%p248) target = $region48
        $region47: #{tpu_custom_call.1} parent=31 // pred_region
          %v251 = vld [vmem:[#allocation3] sm:$0xff]
          %v252 = vld [vmem:[#allocation3 + $0x8] sm:$0xff]
          %v253 = vld [vmem:[#allocation3 + $0x10] sm:$0xff]
          %v254 = vld [vmem:[#allocation3 + $0x18] sm:$0xff]
          %v255 = vmul.f32 %v251, %v251
          %v256 = vmul.f32 %v252, %v252
          %v257 = vmul.f32 %v253, %v253
          %v258 = vmul.f32 %v254, %v254
          %v259 = vadd.f32 %v255, %v256
          %260 = vadd.xlane.f32.xlu0 %v259
          %v261 = vpop.xlane.xlu0 %260
          %v262 = vadd.f32 %v257, %v258
          %263 = vadd.xlane.f32.xlu0 %v262
          %v264 = vpop.xlane.xlu0 %263
          %v265 = vrcp.pop 256.0
          %v266 = vmul.f32 256.0, %v265
          %v267 = vsub.f32 1.0, %v266
          %v268 = vmul.f32 %v265, %v267
          %v269 = vadd.f32 %v265, %v268
          %vm270 = vweird.f32 %v265
          %v271 = vsel %vm270, %v265, %v269
          %v272 = vmul.f32 %v261, %v271
          %v273 = vmul.f32 %v264, %v271
          %v274 = vadd.f32 %v272, 1e-06
          %v275 = vadd.f32 %v273, 1e-06
          %v276 = vrsqrt.pop %v274
          %v277 = vmul.f32 %v276, %v274
          %v278 = vmul.f32 %v277, %v276
          %v279 = vmul.f32 0.5, %v278
          %v280 = vsub.f32 1.5, %v279
          %v281 = vmul.f32 %v276, %v280
          %vm282 = vweird.f32 %v274
          %vm283 = vweird.f32 %v276
          %vm284 = vmor %vm282, %vm283
          %v285 = vsel %vm284, %v276, %v281
          %v286 = vrsqrt.pop %v275
          %v287 = vmul.f32 %v286, %v275
          %v288 = vmul.f32 %v287, %v286
          %v289 = vmul.f32 0.5, %v288
          %v290 = vsub.f32 1.5, %v289
          %v291 = vmul.f32 %v286, %v290
          %vm292 = vweird.f32 %v275
          %vm293 = vweird.f32 %v286
          %vm294 = vmor %vm292, %vm293
          %v295 = vsel %vm294, %v286, %v291
          %v296 = vmul.f32 %v251, %v285
          %v297 = vmul.f32 %v252, %v285
          %v298 = vmul.f32 %v253, %v295
          %v299 = vmul.f32 %v254, %v295
          %v300 = vld [vmem:[#allocation6] sm:$0x3]
          %v302 = vperm.slane %v300, 0
          %v303 = vperm.slane %v300, 1
          %v306 = vmul.f32 %v296, %v302
          %v307 = vmul.f32 %v297, %v303
          %v308 = vmul.f32 %v298, %v302
          %v309 = vmul.f32 %v299, %v303
          %v310 = vpack.c.bf16 %v307, %v306
          %v311 = vpack.c.bf16 %v309, %v308
          %312 = vst [vmem:[#allocation2] sm:$0xff] %v310
          %313 = vst [vmem:[#allocation2 + $0x8] sm:$0xff] %v311
        $region48: #{tpu_custom_call.1} parent=31 // pred_fallthru
          _
        %v314 = vld [vmem:[#allocation2] sm:$0xff]
        %v315 = vld [vmem:[#allocation2 + $0x8] sm:$0xff]
        %v316 = vld [vmem:[%s219] sm:$0xff]
        %v317 = vld [vmem:[%s219 + $0x8] sm:$0xff]
        %v318 = vld [vmem:[%s219 + $0x10] sm:$0xff]
        %v319 = vld [vmem:[%s219 + $0x18] sm:$0xff]
        %v320 = vld [vmem:[%s219 + $0x20] sm:$0xff]
        %v321 = vld [vmem:[%s219 + $0x28] sm:$0xff]
        %v322 = vld [vmem:[%s219 + $0x30] sm:$0xff]
        %v323 = vld [vmem:[%s219 + $0x38] sm:$0xff]
        %v324 = vld [vmem:[%s219 + $0x40] sm:$0xff]
        %v325 = vld [vmem:[%s219 + $0x48] sm:$0xff]
        %v326 = vld [vmem:[%s219 + $0x50] sm:$0xff]
        %v327 = vld [vmem:[%s219 + $0x58] sm:$0xff]
        %v328 = vld [vmem:[%s219 + $0x60] sm:$0xff]
        %v329 = vld [vmem:[%s219 + $0x68] sm:$0xff]
        %v330 = vld [vmem:[%s219 + $0x70] sm:$0xff]
        %v331 = vld [vmem:[%s219 + $0x78] sm:$0xff]
        %v332 = vld [vmem:[%s219 + $0x80] sm:$0xff]
        %v333 = vld [vmem:[%s219 + $0x88] sm:$0xff]
        %v334 = vld [vmem:[%s219 + $0x90] sm:$0xff]
        %v335 = vld [vmem:[%s219 + $0x98] sm:$0xff]
        %v336 = vld [vmem:[%s219 + $0xa0] sm:$0xff]
        %v337 = vld [vmem:[%s219 + $0xa8] sm:$0xff]
        %v338 = vld [vmem:[%s219 + $0xb0] sm:$0xff]
        %v339 = vld [vmem:[%s219 + $0xb8] sm:$0xff]
        %v340 = vld [vmem:[%s219 + $0xc0] sm:$0xff]
        %v341 = vld [vmem:[%s219 + $0xc8] sm:$0xff]
        %v342 = vld [vmem:[%s219 + $0xd0] sm:$0xff]
        %v343 = vld [vmem:[%s219 + $0xd8] sm:$0xff]
        %v344 = vld [vmem:[%s219 + $0xe0] sm:$0xff]
        %v345 = vld [vmem:[%s219 + $0xe8] sm:$0xff]
        %v346 = vld [vmem:[%s219 + $0xf0] sm:$0xff]
        %v347 = vld [vmem:[%s219 + $0xf8] sm:$0xff]
        %v348 = vld [vmem:[%s219 + $0x100] sm:$0xff]
        %v349 = vld [vmem:[%s219 + $0x108] sm:$0xff]
        %v350 = vld [vmem:[%s219 + $0x110] sm:$0xff]
        %v351 = vld [vmem:[%s219 + $0x118] sm:$0xff]
        %v352 = vld [vmem:[%s219 + $0x120] sm:$0xff]
        %v353 = vld [vmem:[%s219 + $0x128] sm:$0xff]
        %v354 = vld [vmem:[%s219 + $0x130] sm:$0xff]
        %v355 = vld [vmem:[%s219 + $0x138] sm:$0xff]
        %v356 = vld [vmem:[%s219 + $0x140] sm:$0xff]
        %v357 = vld [vmem:[%s219 + $0x148] sm:$0xff]
        %v358 = vld [vmem:[%s219 + $0x150] sm:$0xff]
        %v359 = vld [vmem:[%s219 + $0x158] sm:$0xff]
        %v360 = vld [vmem:[%s219 + $0x160] sm:$0xff]
        %v361 = vld [vmem:[%s219 + $0x168] sm:$0xff]
        %v362 = vld [vmem:[%s219 + $0x170] sm:$0xff]
        %v363 = vld [vmem:[%s219 + $0x178] sm:$0xff]
        %v364 = vld [vmem:[%s219 + $0x180] sm:$0xff]
        %v365 = vld [vmem:[%s219 + $0x188] sm:$0xff]
        %v366 = vld [vmem:[%s219 + $0x190] sm:$0xff]
        %v367 = vld [vmem:[%s219 + $0x198] sm:$0xff]
        %v368 = vld [vmem:[%s219 + $0x1a0] sm:$0xff]
        %v369 = vld [vmem:[%s219 + $0x1a8] sm:$0xff]
        %v370 = vld [vmem:[%s219 + $0x1b0] sm:$0xff]
        %v371 = vld [vmem:[%s219 + $0x1b8] sm:$0xff]
        %v372 = vld [vmem:[%s219 + $0x1c0] sm:$0xff]
        %v373 = vld [vmem:[%s219 + $0x1c8] sm:$0xff]
        %v374 = vld [vmem:[%s219 + $0x1d0] sm:$0xff]
        %v375 = vld [vmem:[%s219 + $0x1d8] sm:$0xff]
        %v376 = vld [vmem:[%s219 + $0x1e0] sm:$0xff]
        %v377 = vld [vmem:[%s219 + $0x1e8] sm:$0xff]
        %v378 = vld [vmem:[%s219 + $0x1f0] sm:$0xff]
        %v379 = vld [vmem:[%s219 + $0x1f8] sm:$0xff]
        %v380 = vpack.c.bf16 %v318, %v316
        %v381 = vpack.c.bf16 %v319, %v317
        %v382 = vpack.c.bf16 %v322, %v320
        %v383 = vpack.c.bf16 %v323, %v321
        %v384 = vpack.c.bf16 %v326, %v324
        %v385 = vpack.c.bf16 %v327, %v325
        %v386 = vpack.c.bf16 %v330, %v328
        %v387 = vpack.c.bf16 %v331, %v329
        %v388 = vpack.c.bf16 %v334, %v332
        %v389 = vpack.c.bf16 %v335, %v333
        %v390 = vpack.c.bf16 %v338, %v336
        %v391 = vpack.c.bf16 %v339, %v337
        %v392 = vpack.c.bf16 %v342, %v340
        %v393 = vpack.c.bf16 %v343, %v341
        %v394 = vpack.c.bf16 %v346, %v344
        %v395 = vpack.c.bf16 %v347, %v345
        %v396 = vpack.c.bf16 %v350, %v348
        %v397 = vpack.c.bf16 %v351, %v349
        %v398 = vpack.c.bf16 %v354, %v352
        %v399 = vpack.c.bf16 %v355, %v353
        %v400 = vpack.c.bf16 %v358, %v356
        %v401 = vpack.c.bf16 %v359, %v357
        %v402 = vpack.c.bf16 %v362, %v360
        %v403 = vpack.c.bf16 %v363, %v361
        %v404 = vpack.c.bf16 %v366, %v364
        %v405 = vpack.c.bf16 %v367, %v365
        %v406 = vpack.c.bf16 %v370, %v368
        %v407 = vpack.c.bf16 %v371, %v369
        %v408 = vpack.c.bf16 %v374, %v372
        %v409 = vpack.c.bf16 %v375, %v373
        %v410 = vpack.c.bf16 %v378, %v376
        %v411 = vpack.c.bf16 %v379, %v377
        %v414 = vunpack.c.l.b16 %v314
        %v415 = vunpack.c.h.b16 %v314
        %v416 = vunpack.c.l.b16 %v315
        %v417 = vunpack.c.h.b16 %v315
        %v418 = vpack.c.b16 %v416, %v414
        %v419 = vpack.c.b16 %v417, %v415
        %422 = vmatpush.bf16.msra.mxu0 %v394
        %423 = vmatpush.bf16.msra.mxu0 %v392
        %424 = vmatpush.bf16.msra.mxu0 %v390
        %425 = vmatpush.bf16.msra.mxu0 %v388
        %426 = vmatpush.bf16.msra.mxu0 %v386
        %427 = vmatpush.bf16.msra.mxu0 %v384
        %428 = vmatpush.bf16.msra.mxu0 %v382
        %429 = vmatpush.bf16.msra.mxu0 %v380
        %430 = vmatmul.bf16.gmra.mxu0 %v418
        %v431 = vpop.f32.mrf.mxu0
        %v432 = vadd.f32 0.0, %v431
        %v433 = vpop.f32.mrf.mxu0
        %v434 = vadd.f32 0.0, %v433
        %435 = vdwg.mxu0
        %436 = vmatpush.bf16.msra.mxu0 %v410
        %437 = vmatpush.bf16.msra.mxu0 %v408
        %438 = vmatpush.bf16.msra.mxu0 %v406
        %439 = vmatpush.bf16.msra.mxu0 %v404
        %440 = vmatpush.bf16.msra.mxu0 %v402
        %441 = vmatpush.bf16.msra.mxu0 %v400
        %442 = vmatpush.bf16.msra.mxu0 %v398
        %443 = vmatpush.bf16.msra.mxu0 %v396
        %444 = vmatmul.bf16.gmra.mxu0 %v419
        %v445 = vpop.f32.mrf.mxu0
        %v446 = vadd.f32 %v432, %v445
        %v447 = vpop.f32.mrf.mxu0
        %v448 = vadd.f32 %v434, %v447
        %449 = vdwg.mxu0
        %450 = vmatpush.bf16.msra.mxu0 %v395
        %451 = vmatpush.bf16.msra.mxu0 %v393
        %452 = vmatpush.bf16.msra.mxu0 %v391
        %453 = vmatpush.bf16.msra.mxu0 %v389
        %454 = vmatpush.bf16.msra.mxu0 %v387
        %455 = vmatpush.bf16.msra.mxu0 %v385
        %456 = vmatpush.bf16.msra.mxu0 %v383
        %457 = vmatpush.bf16.msra.mxu0 %v381
        %458 = vmatmul.bf16.gmra.mxu0 %v418
        %v459 = vpop.f32.mrf.mxu0
        %v460 = vadd.f32 0.0, %v459
        %v461 = vpop.f32.mrf.mxu0
        %v462 = vadd.f32 0.0, %v461
        %463 = vdwg.mxu0
        %464 = vmatpush.bf16.msra.mxu0 %v411
        %465 = vmatpush.bf16.msra.mxu0 %v409
        %466 = vmatpush.bf16.msra.mxu0 %v407
        %467 = vmatpush.bf16.msra.mxu0 %v405
        %468 = vmatpush.bf16.msra.mxu0 %v403
        %469 = vmatpush.bf16.msra.mxu0 %v401
        %470 = vmatpush.bf16.msra.mxu0 %v399
        %471 = vmatpush.bf16.msra.mxu0 %v397
        %472 = vmatmul.bf16.gmra.mxu0 %v419
        %v473 = vpop.f32.mrf.mxu0
        %v474 = vadd.f32 %v460, %v473
        %v475 = vpop.f32.mrf.mxu0
        %v476 = vadd.f32 %v462, %v475
        %477 = vdwg.mxu0
        %478 = vst [vmem:[%s242] sm:$0xff] %v446
        %479 = vst [vmem:[%s242 + $0x8] sm:$0xff] %v474
        %480 = vst [vmem:[%s242 + $0x10] sm:$0xff] %v448
        %481 = vst [vmem:[%s242 + $0x18] sm:$0xff] %v476
        %s482 = sand.u32 %s114, 1
        %s483 = scalar_lea.sflag [#allocation5], %s482
        %s484 = sand.u32 %s114, 1
        %s485 = smul.addr %s484, 32
        %s486 = scalar_lea.vmem [#allocation9], %s485
        // Predicated region
        $region49: #{tpu_custom_call.1} parent=31 // pred_check
          %p487 = pneg %p124
        $region50: #{tpu_custom_call.1} parent=31 // pred_check_branch
          %489 = sbr.rel (%p487) target = $region52
        $region51: #{tpu_custom_call.1} parent=31 // pred_region
          %s490 = smul.u32 2, %s23
          %s491 = smul.u32 2, %s24
          %493 = vsyncadd %s483, 0
          %s494 = smul.addr %s490, 4
          %s495 = sadd.s32 %s491, %s494
          %s496 = smul.addr %s495, 8
          %s497 = scalar_lea.hbm %s3, %s496
          %s498 = sshll.u32 %s486, 4
          %s499 = int_to_ptr.vmem [resolvable:$true] %s498
          %s500 = sshll.u32 %s497, 4
          %s501 = int_to_ptr.hbm [resolvable:$true] %s500
          %506 = dma.vmem_to_hbm [thread:$0]  %s499, 512, %s501, %s483, 256, 512, 16
        $region52: #{tpu_custom_call.1} parent=31 // pred_fallthru
          _
      $region32: #{tpu_custom_call.1} parent=5 // pred_fallthru
        _
      %p507 = scmp.le.s32.totalorder 2, %s14
      // Predicated region
      $region53: #{tpu_custom_call.1} parent=5 // pred_check
        %p508 = pneg %p507
      $region54: #{tpu_custom_call.1} parent=5 // pred_check_branch
        %510 = sbr.rel (%p508) target = $region56
      $region55: #{tpu_custom_call.1} parent=5 // pred_region
        %s511 = ssub.s32 %s14, 2
        // Predicated region
        $region57: #{tpu_custom_call.1} parent=55 // pred_check
          %p512 = pneg %p130
        $region58: #{tpu_custom_call.1} parent=55 // pred_check_branch
          %514 = sbr.rel (%p512) target = $region60
        $region59: #{tpu_custom_call.1} parent=55 // pred_region
          %s515 = sand.u32 %s115, 1
          %s516 = scalar_lea.sflag [#allocation5], %s515
          %s517 = sand.u32 %s115, 1
          %s518 = smul.addr %s517, 32
          %s519 = scalar_lea.vmem [#allocation9], %s518
          %521 = dma.done %s516, 512
        $region60: #{tpu_custom_call.1} parent=55 // pred_fallthru
          _
      $region56: #{tpu_custom_call.1} parent=5 // pred_fallthru
        _
    $region6: #{tpu_custom_call.1} parent=1 // loop_footer
      %s18 = sadd.s32 1, %s14
    $region7: #{tpu_custom_call.1} parent=1 // loop_footer_branch
      %13 = sbr.rel target = $region3
    $region8: #{tpu_custom_call.1} parent=1 // loop_exit
      _
    %522 = vsyncpa [#allocation4], 1
    %s523 = scalar_lea.sflag [#allocation4], 1
    %524 = vsyncpa %s523, 1
    %525 = vsyncpa [#allocation7], 1
    %526 = vsyncpa [#allocation5], 1
    %s527 = scalar_lea.sflag [#allocation5], 1
    %528 = vsyncpa %s527, 1

</llo_original>
